<compile_context>
chip_gen: v5e
topology: v5e:2x2
jax: 0.10.0
libtpu: 0.0.40
codegen_flags: <defaults>
</compile_context>

<pallas_src>
import functools

import numpy as np
import jax
import jax.numpy as jnp
from jax import lax
from jax.experimental import pallas as pl
from jax.experimental.pallas import tpu as pltpu

EMBEDDING_LEN = 7  # mutate_mask hard-codes 7 shifted copies


def _round_up(x, m):
    return ((x + m - 1) // m) * m


# ---------------------------------------------------------------------------
# Pallas kernel: tiled (N, L) x (M, L)^T -> (N, M) matmul, f32 accumulator
# ---------------------------------------------------------------------------
def _features_kernel(m_ref, f_ref, o_ref, acc_ref):
    @pl.when(pl.program_id(2) == 0)
    def _init():
        acc_ref[...] = jnp.zeros_like(acc_ref)

    m = m_ref[...].astype(jnp.float32)          # (TN, TL) bf16 -> f32 (exact for 0/1)
    f = f_ref[...]                              # (TM, TL) f32
    acc_ref[...] += lax.dot_general(
        m, f,
        dimension_numbers=(((1,), (1,)), ((), ())),   # contract L (lane axis) of both
        preferred_element_type=jnp.float32)

    @pl.when(pl.program_id(2) == pl.num_programs(2) - 1)
    def _writeback():
        o_ref[...] = acc_ref[...]


def conv_features(masks_flat, frames_flat):
    """masks_flat: (N, L) bf16, frames_flat: (M, L) f32 -> (N, M) f32.

    out[n, m] = sum_l masks_flat[n, l] * frames_flat[m, l]
    """
    N, L = masks_flat.shape
    M, L2 = frames_flat.shape
    assert L == L2

    # Tile sizes: rows aligned to the bf16 sublane pack (16), output lanes to
    # 128, reduction tiles up to 4096 lanes wide.  Double-buffered resident
    # VMEM stays < ~13 MiB -> safe on v5e (16 MiB default scoped), v6e
    # (32/128 MiB) and v7x (32/64 MiB).
    TN = min(256, _round_up(N, 16))
    TM = min(256, _round_up(M, 128))
    TL = min(4096, _round_up(L, 128))

    N_pad = _round_up(N, TN)
    M_pad = _round_up(M, TM)
    L_pad = _round_up(L, TL)

    masks_p = jnp.pad(masks_flat, ((0, N_pad - N), (0, L_pad - L)))
    frames_p = jnp.pad(frames_flat, ((0, M_pad - M), (0, L_pad - L)))

    grid = (N_pad // TN, M_pad // TM, L_pad // TL)

    bytes_accessed = (masks_p.size * masks_p.dtype.itemsize
                      + frames_p.size * frames_p.dtype.itemsize
                      + N_pad * M_pad * 4)
    cost = pl.CostEstimate(flops=2 * N_pad * M_pad * L_pad,
                           transcendentals=0,
                           bytes_accessed=bytes_accessed)

    out = pl.pallas_call(
        _features_kernel,
        out_shape=jax.ShapeDtypeStruct((N_pad, M_pad), jnp.float32),
        grid_spec=pltpu.PrefetchScalarGridSpec(
            num_scalar_prefetch=0,
            grid=grid,
            in_specs=[pl.BlockSpec((TN, TL), lambda i, j, l: (i, l)),
                      pl.BlockSpec((TM, TL), lambda i, j, l: (j, l))],
            out_specs=pl.BlockSpec((TN, TM), lambda i, j, l: (i, j)),
            scratch_shapes=[pltpu.VMEM((TN, TM), jnp.float32)]),
        compiler_params=pltpu.CompilerParams(
            dimension_semantics=("parallel", "parallel", "arbitrary"),
            vmem_limit_bytes=32 * 1024 * 1024),
        cost_estimate=cost,
    )(masks_p, frames_p)

    return out[:N, :M]


# ---------------------------------------------------------------------------
# Forward-pass glue (all on-device, jit-able)
# ---------------------------------------------------------------------------
def _nonzero_extent(nz, axis):
    """max(idx) - min(idx) + 1 over nonzero entries along `axis` (np.nonzero eq.)."""
    reduce_axes = tuple(a for a in range(nz.ndim) if a != axis)
    line = jnp.any(nz, axis=reduce_axes)
    dim = line.shape[0]
    idx = jnp.arange(dim, dtype=jnp.int32)
    has_any = jnp.any(line)
    mn = jnp.min(jnp.where(line, idx, dim))
    mx = jnp.max(jnp.where(line, idx, -1))
    # Reference crashes on an all-zero mask; fall back to a shift of 1 instead.
    return jnp.where(has_any, mx - mn + 1, 1).astype(jnp.int32)


def _shift_list(z_delta, x_delta, y_delta):
    # torch.roll shifts applied to the MASK in the reference (dims = Z, X, Y).
    return [(0, 0, 0),
            (0, x_delta, 0), (0, -x_delta, 0),
            (0, 0, y_delta), (0, 0, -y_delta),
            (z_delta, 0, 0), (-z_delta, 0, 0)]


def _rolled_frames(frame, z_delta, x_delta, y_delta):
    """frame: (1, C, Z, X, Y) -> (7, C, Z, X, Y) rolled by the NEGATIVE shifts
    so that <roll(mask, s), frame> == <mask, rolled_frame[e]>."""
    # TODO(synk): these rolls could be fused into the kernel with pltpu.roll on
    # a VMEM-resident frame tile; frames are tiny, so they are built here.
    f = frame[0]
    rolls = [jnp.roll(f, shift=(-sz, -sx, -sy), axis=(1, 2, 3))
             for (sz, sx, sy) in _shift_list(z_delta, x_delta, y_delta)]
    return jnp.stack(rolls, axis=0)


@functools.partial(jax.jit, static_argnames=("train",))
def detector_forward(frame1, frame2, mask, train=True):
    """Mirrors Detector.forward(frame1, frame2, mask, train)."""
    N, C, Z, X, Y = mask.shape
    # The conv3d -> dot-product collapse is only valid when the conv "kernel"
    # spans the whole input volume.
    assert frame2.shape == (1, C, Z, X, Y), "frame must match the mask volume"
    if train:
        assert frame1.shape == (1, C, Z, X, Y), "frame must match the mask volume"
    L = C * Z * X * Y

    nz = mask != 0
    z_delta = _nonzero_extent(nz, 2)
    x_delta = _nonzero_extent(nz, 3)
    y_delta = _nonzero_extent(nz, 4)

    frames = [frame1, frame2] if train else [frame2]
    n_frames = len(frames)
    rolled = jnp.stack(
        [_rolled_frames(f.astype(jnp.float32), z_delta, x_delta, y_delta)
         for f in frames], axis=0)                        # (F, 7, C, Z, X, Y)
    frames_flat = rolled.reshape(n_frames * EMBEDDING_LEN, L)

    # 0/1 masks are exactly representable in bf16 -> lossless, half the bytes.
    masks_flat = mask.reshape(N, L).astype(jnp.bfloat16)

    feats = conv_features(masks_flat, frames_flat)        # (N, F*7)
    feats = feats.reshape(N, n_frames, EMBEDDING_LEN)

    if train:
        return feats[:, 0, :], feats[:, 1, :]
    return None, feats[:, 0, :]


# TODO(synk): Detector.predict / train_feat / plot_dbscan / graph_3d (sklearn
# PCA/DBSCAN/KNN, pickle I/O, matplotlib) are not part of the forward hot path
# and have no Pallas equivalent.

if __name__ == "__main__":
    key = jax.random.PRNGKey(0)
    k_m, k_f1, k_f2 = jax.random.split(key, 3)

    # Small shapes consistent with the forward pass:
    #   mask:   (N=2, C=1, Z=4, X=8, Y=8)   — binary cluster masks
    #   frames: (B=1, C=1, Z=4, X=8, Y=8)   — conv3d "valid" output is 1x1x1
    N, C, Z, X, Y = 2, 1, 4, 8, 8
    mask = (jax.random.uniform(k_m, (N, C, Z, X, Y)) < 0.3).astype(jnp.float32)
    frame1 = jax.random.normal(k_f1, (1, C, Z, X, Y), dtype=jnp.float32)
    frame2 = jax.random.normal(k_f2, (1, C, Z, X, Y), dtype=jnp.float32)

    f1_feat, f2_feat = detector_forward(frame1, frame2, mask, train=True)
    f1_feat, f2_feat = jax.block_until_ready((f1_feat, f2_feat))

    # Reference computed the ORIGINAL way (roll the masks, collapsed conv3d).
    mask_np = np.asarray(mask)
    locs = np.argwhere(mask_np != 0)
    zd = int(locs[:, 2].max() - locs[:, 2].min() + 1)
    xd = int(locs[:, 3].max() - locs[:, 3].min() + 1)
    yd = int(locs[:, 4].max() - locs[:, 4].min() + 1)

    w_rows = []
    for n in range(N):
        for (sz, sx, sy) in _shift_list(zd, xd, yd):
            w_rows.append(np.roll(mask_np[n], shift=(sz, sx, sy), axis=(1, 2, 3)))
    w_ref = np.stack(w_rows, axis=0).reshape(N * EMBEDDING_LEN, -1)
    ref1 = (w_ref @ np.asarray(frame1).reshape(-1)).reshape(N, EMBEDDING_LEN)
    ref2 = (w_ref @ np.asarray(frame2).reshape(-1)).reshape(N, EMBEDDING_LEN)

    np.testing.assert_allclose(np.asarray(f1_feat), ref1, rtol=1e-5, atol=1e-5)
    np.testing.assert_allclose(np.asarray(f2_feat), ref2, rtol=1e-5, atol=1e-5)

    # Inference path (train=False): frame1 features are None.
    f1_none, f2_only = detector_forward(frame1, frame2, mask, train=False)
    f2_only = jax.block_until_ready(f2_only)
    assert f1_none is None
    np.testing.assert_allclose(np.asarray(f2_only), ref2, rtol=1e-5, atol=1e-5)

    assert f1_feat.shape == (N, EMBEDDING_LEN)
    assert f2_feat.shape == (N, EMBEDDING_LEN)
    print("KERNEL_OK")
</pallas_src>

<mosaic_0001>
module attributes {stable_mosaic.version = 11 : i64} {
  func.func @_features_kernel(%arg0: i32, %arg1: i32, %arg2: i32, %arg3: memref<16x256xbf16, #tpu.memory_space<vmem>>, %arg4: memref<128x256xf32, #tpu.memory_space<vmem>>, %arg5: memref<16x128xf32, #tpu.memory_space<vmem>>, %arg6: memref<16x128xf32, #tpu.memory_space<vmem>>) attributes {dimension_semantics = [#tpu.dimension_semantics<parallel>, #tpu.dimension_semantics<parallel>, #tpu.dimension_semantics<arbitrary>], iteration_bounds = array<i64: 1, 1, 1>, scalar_prefetch = 0 : i64, scratch_operands = 1 : i64, tpu.core_type = #tpu.core_type<tc>, window_params = [{transform_indices = @transform_0, window_bounds = array<i64: 16, 256>}, {transform_indices = @transform_1, window_bounds = array<i64: 128, 256>}, {transform_indices = @transform_2, window_bounds = array<i64: 16, 128>}]} {
    %c0_i32 = arith.constant 0 : i32
    %0 = arith.cmpi eq, %arg2, %c0_i32 : i32
    %1 = arith.extui %0 : i1 to i32
    %c0_i32_0 = arith.constant 0 : i32
    %2 = arith.cmpi ne, %1, %c0_i32_0 : i32
    scf.if %2 {
      %cst_10 = arith.constant 0.000000e+00 : f32
      %13 = vector.broadcast %cst_10 : f32 to vector<16x128xf32>
      %c0_11 = arith.constant 0 : index
      %c0_12 = arith.constant 0 : index
      %14 = vector.load %arg6[%c0_11, %c0_12] : memref<16x128xf32, #tpu.memory_space<vmem>>, vector<16x128xf32>
      tpu.vector_store %arg6[%c0_11, %c0_12], %13 {strides = array<i32>} : memref<16x128xf32, #tpu.memory_space<vmem>>, vector<16x128xf32>,
    } else {
    }
    %c0 = arith.constant 0 : index
    %c0_1 = arith.constant 0 : index
    %3 = vector.load %arg3[%c0, %c0_1] : memref<16x256xbf16, #tpu.memory_space<vmem>>, vector<16x256xbf16>
    %4 = arith.extf %3 : vector<16x256xbf16> to vector<16x256xf32>
    %c0_2 = arith.constant 0 : index
    %c0_3 = arith.constant 0 : index
    %5 = vector.load %arg4[%c0_2, %c0_3] : memref<128x256xf32, #tpu.memory_space<vmem>>, vector<128x256xf32>
    %c0_4 = arith.constant 0 : index
    %c0_5 = arith.constant 0 : index
    %6 = vector.load %arg6[%c0_4, %c0_5] : memref<16x128xf32, #tpu.memory_space<vmem>>, vector<16x128xf32>
    %cst = arith.constant dense<0.000000e+00> : vector<16x128xf32>
    %7 = tpu.matmul %4, %5, %cst {dimension_numbers = #tpu.dot_dimension_numbers<[1], [1], [0], [0], [0, 0, 1, 0], [], []>} : vector<16x256xf32>, vector<128x256xf32>, vector<16x128xf32> -> vector<16x128xf32>
    %8 = arith.addf %6, %7 : vector<16x128xf32>
    %c0_6 = arith.constant 0 : index
    %c0_7 = arith.constant 0 : index
    %9 = vector.load %arg6[%c0_6, %c0_7] : memref<16x128xf32, #tpu.memory_space<vmem>>, vector<16x128xf32>
    tpu.vector_store %arg6[%c0_6, %c0_7], %8 {strides = array<i32>} : memref<16x128xf32, #tpu.memory_space<vmem>>, vector<16x128xf32>,
    %c0_i32_8 = arith.constant 0 : i32
    %10 = arith.cmpi eq, %arg2, %c0_i32_8 : i32
    %11 = arith.extui %10 : i1 to i32
    %c0_i32_9 = arith.constant 0 : i32
    %12 = arith.cmpi ne, %11, %c0_i32_9 : i32
    scf.if %12 {
      %c0_10 = arith.constant 0 : index
      %c0_11 = arith.constant 0 : index
      %13 = vector.load %arg6[%c0_10, %c0_11] : memref<16x128xf32, #tpu.memory_space<vmem>>, vector<16x128xf32>
      %c0_12 = arith.constant 0 : index
      %c0_13 = arith.constant 0 : index
      %14 = vector.load %arg5[%c0_12, %c0_13] : memref<16x128xf32, #tpu.memory_space<vmem>>, vector<16x128xf32>
      tpu.vector_store %arg5[%c0_12, %c0_13], %13 {strides = array<i32>} : memref<16x128xf32, #tpu.memory_space<vmem>>, vector<16x128xf32>,
    } else {
    }
    return
  }
  func.func @transform_0(%arg0: i32, %arg1: i32, %arg2: i32) -> (i32, i32) {
    %c0_i32 = arith.constant 0 : i32
    return %arg0, %arg2 : i32, i32
  }
  func.func @transform_1(%arg0: i32, %arg1: i32, %arg2: i32) -> (i32, i32) {
    %c0_i32 = arith.constant 0 : i32
    return %arg1, %arg2 : i32, i32
  }
  func.func @transform_2(%arg0: i32, %arg1: i32, %arg2: i32) -> (i32, i32) {
    %c0_i32 = arith.constant 0 : i32
    return %arg0, %arg1 : i32, i32
  }
}

</mosaic_0001>

<llo_original>
// kernel: detector_forward.1
$region0: #{detector_forward.1}
  #allocation0 [shape = 'u32[]', space=smem, size = 0x4, offset = 0x4, fixed_abs, tag = 'smem constant byte address 0x4 - core index']
  #allocation1 [shape = 'u32[72,128]{1,0:T(1,128)}', space=vmem, size = 0x9000, scoped, tag = 'internal scratch']
  #allocation2 [shape = 'f32[16,128]{1,0:T(8,128)}', space=vmem, size = 0x2000, scoped, tag = 'scratch operand']
  %s0 = inlined_call_operand.vmem [shape: bf16[16,256], index: 0, kind: input, shape index: {}]
  %s1 = inlined_call_operand.vmem [shape: f32[128,256], index: 1, kind: input, shape index: {}]
  %s2 = inlined_call_operand.vmem [shape: f32[16,128], index: 2, kind: output, shape index: {}]
  %s3 = sld [smem:[#allocation0]]
  $region26: #{detector_forward.1} parent=0
    _
  %s5 = ssub.s32 1, %s3
  %s6 = scalar_select 0, %s5, %s3
  // Predicated region
  $region2: #{detector_forward.1} parent=0 // pred_check
    _
  $region3: #{detector_forward.1} parent=0 // pred_check_branch
    %8 = sbr.rel (0) target = $region5
  $region4: #{detector_forward.1} parent=0 // pred_region
    _
  $region5: #{detector_forward.1} parent=0 // pred_fallthru
    _
  // Predicated region
  $region6: #{detector_forward.1} parent=0 // pred_check
    _
  $region7: #{detector_forward.1} parent=0 // pred_check_branch
    %10 = sbr.rel (0) target = $region9
  $region8: #{detector_forward.1} parent=0 // pred_region
    _
  $region9: #{detector_forward.1} parent=0 // pred_fallthru
    _
  %p11 = scmp.eq.s32.totalorder 0, 0
  // Predicated region
  $region10: #{detector_forward.1} parent=0 // pred_check
    %p12 = pneg %p11
  $region11: #{detector_forward.1} parent=0 // pred_check_branch
    %14 = sbr.rel (%p12) target = $region13
  $region12: #{detector_forward.1} parent=0 // pred_region
    %15 = vst [vmem:[#allocation2] sm:$0xff] 0.0
    %16 = vst [vmem:[#allocation2 + $0x8] sm:$0xff] 0.0
  $region13: #{detector_forward.1} parent=0 // pred_fallthru
    _
  %v17 = vld [vmem:[%s0] sm:$0xff]
  %v18 = vld [vmem:[%s0 + $0x8] sm:$0xff]
  %v19 = vunpack.c.l.bf16 %v17
  %v20 = vunpack.c.h.bf16 %v17
  %v21 = vunpack.c.l.bf16 %v18
  %v22 = vunpack.c.h.bf16 %v18
  %v23 = vld [vmem:[%s1] sm:$0xff]
  %v24 = vld [vmem:[%s1 + $0x8] sm:$0xff]
  %v25 = vld [vmem:[%s1 + $0x10] sm:$0xff]
  %v26 = vld [vmem:[%s1 + $0x18] sm:$0xff]
  %v27 = vld [vmem:[%s1 + $0x20] sm:$0xff]
  %v28 = vld [vmem:[%s1 + $0x28] sm:$0xff]
  %v29 = vld [vmem:[%s1 + $0x30] sm:$0xff]
  %v30 = vld [vmem:[%s1 + $0x38] sm:$0xff]
  %v31 = vld [vmem:[%s1 + $0x40] sm:$0xff]
  %v32 = vld [vmem:[%s1 + $0x48] sm:$0xff]
  %v33 = vld [vmem:[%s1 + $0x50] sm:$0xff]
  %v34 = vld [vmem:[%s1 + $0x58] sm:$0xff]
  %v35 = vld [vmem:[%s1 + $0x60] sm:$0xff]
  %v36 = vld [vmem:[%s1 + $0x68] sm:$0xff]
  %v37 = vld [vmem:[%s1 + $0x70] sm:$0xff]
  %v38 = vld [vmem:[%s1 + $0x78] sm:$0xff]
  %v39 = vld [vmem:[%s1 + $0x80] sm:$0xff]
  %v40 = vld [vmem:[%s1 + $0x88] sm:$0xff]
  %v41 = vld [vmem:[%s1 + $0x90] sm:$0xff]
  %v42 = vld [vmem:[%s1 + $0x98] sm:$0xff]
  %v43 = vld [vmem:[%s1 + $0xa0] sm:$0xff]
  %v44 = vld [vmem:[%s1 + $0xa8] sm:$0xff]
  %v45 = vld [vmem:[%s1 + $0xb0] sm:$0xff]
  %v46 = vld [vmem:[%s1 + $0xb8] sm:$0xff]
  %v47 = vld [vmem:[%s1 + $0xc0] sm:$0xff]
  %v48 = vld [vmem:[%s1 + $0xc8] sm:$0xff]
  %v49 = vld [vmem:[%s1 + $0xd0] sm:$0xff]
  %v50 = vld [vmem:[%s1 + $0xd8] sm:$0xff]
  %v51 = vld [vmem:[%s1 + $0xe0] sm:$0xff]
  %v52 = vld [vmem:[%s1 + $0xe8] sm:$0xff]
  %v53 = vld [vmem:[%s1 + $0xf0] sm:$0xff]
  %v54 = vld [vmem:[%s1 + $0xf8] sm:$0xff]
  %v55 = vld [vmem:[#allocation2] sm:$0xff]
  %v56 = vld [vmem:[#allocation2 + $0x8] sm:$0xff]
  %57 = vmatpush.xpose.msra.mxu0 %v53
  %58 = vmatpush.xpose.msra.mxu0 %v51
  %59 = vmatpush.xpose.msra.mxu0 %v49
  %60 = vmatpush.xpose.msra.mxu0 %v47
  %61 = vmatpush.xpose.msra.mxu0 %v45
  %62 = vmatpush.xpose.msra.mxu0 %v43
  %63 = vmatpush.xpose.msra.mxu0 %v41
  %64 = vmatpush.xpose.msra.mxu0 %v39
  %65 = vmatpush.xpose.msra.mxu0 %v37
  %66 = vmatpush.xpose.msra.mxu0 %v35
  %67 = vmatpush.xpose.msra.mxu0 %v33
  %68 = vmatpush.xpose.msra.mxu0 %v31
  %69 = vmatpush.xpose.msra.mxu0 %v29
  %70 = vmatpush.xpose.msra.mxu0 %v27
  %71 = vmatpush.xpose.msra.mxu0 %v25
  %72 = vmatpush.xpose.msra.mxu0 %v23
  %73 = vmatmul.f32.gmra.mxu0 %v19
  %v74 = vpop.f32.mrf.mxu0
  %v75 = vadd.f32 0.0, %v74
  %76 = vmatmul.f32.gmra.mxu0 %v21
  %v77 = vpop.f32.mrf.mxu0
  %v78 = vadd.f32 0.0, %v77
  %79 = vdwg.mxu0
  %80 = vmatpush.xpose.msra.mxu0 %v54
  %81 = vmatpush.xpose.msra.mxu0 %v52
  %82 = vmatpush.xpose.msra.mxu0 %v50
  %83 = vmatpush.xpose.msra.mxu0 %v48
  %84 = vmatpush.xpose.msra.mxu0 %v46
  %85 = vmatpush.xpose.msra.mxu0 %v44
  %86 = vmatpush.xpose.msra.mxu0 %v42
  %87 = vmatpush.xpose.msra.mxu0 %v40
  %88 = vmatpush.xpose.msra.mxu0 %v38
  %89 = vmatpush.xpose.msra.mxu0 %v36
  %90 = vmatpush.xpose.msra.mxu0 %v34
  %91 = vmatpush.xpose.msra.mxu0 %v32
  %92 = vmatpush.xpose.msra.mxu0 %v30
  %93 = vmatpush.xpose.msra.mxu0 %v28
  %94 = vmatpush.xpose.msra.mxu0 %v26
  %95 = vmatpush.xpose.msra.mxu0 %v24
  %96 = vmatmul.f32.gmra.mxu0 %v20
  %v97 = vpop.f32.mrf.mxu0
  %v98 = vadd.f32 %v75, %v97
  %99 = vmatmul.f32.gmra.mxu0 %v22
  %v100 = vpop.f32.mrf.mxu0
  %v101 = vadd.f32 %v78, %v100
  %102 = vdwg.mxu0
  %v103 = vadd.f32 %v55, %v98
  %v104 = vadd.f32 %v56, %v101
  %105 = vst [vmem:[#allocation2] sm:$0xff] %v103
  %106 = vst [vmem:[#allocation2 + $0x8] sm:$0xff] %v104
  // Predicated region
  $region14: #{detector_forward.1} parent=0 // pred_check
    %p107 = pneg %p11
  $region15: #{detector_forward.1} parent=0 // pred_check_branch
    %109 = sbr.rel (%p107) target = $region17
  $region16: #{detector_forward.1} parent=0 // pred_region
    %v110 = vld [vmem:[#allocation2] sm:$0xff]
    %v111 = vld [vmem:[#allocation2 + $0x8] sm:$0xff]
    %112 = vst [vmem:[%s2] sm:$0xff] %v110
    %113 = vst [vmem:[%s2 + $0x8] sm:$0xff] %v111
  $region17: #{detector_forward.1} parent=0 // pred_fallthru
    _
  // Predicated region
  $region18: #{detector_forward.1} parent=0 // pred_check
    _
  $region19: #{detector_forward.1} parent=0 // pred_check_branch
    %115 = sbr.rel (0) target = $region21
  $region20: #{detector_forward.1} parent=0 // pred_region
    _
  $region21: #{detector_forward.1} parent=0 // pred_fallthru
    _
  // Predicated region
  $region22: #{detector_forward.1} parent=0 // pred_check
    _
  $region23: #{detector_forward.1} parent=0 // pred_check_branch
    %117 = sbr.rel (0) target = $region25
  $region24: #{detector_forward.1} parent=0 // pred_region
    _
  $region25: #{detector_forward.1} parent=0 // pred_fallthru
    _

</llo_original>
